<compile_context>
chip_gen: v6e
topology: v6e:2x2x1
jax: 0.10.0
libtpu: 0.0.40
codegen_flags: <defaults>
</compile_context>

<pallas_src>
import functools
import math

import jax
import jax.numpy as jnp
from jax import lax
from jax.experimental import pallas as pl
from jax.experimental.pallas import tpu as pltpu

EPS = 1e-12  # F.normalize default eps
_MIB = 1024 * 1024


def _round_up(x: int, m: int) -> int:
    return ((x + m - 1) // m) * m


def _vmem_budget():
    """Generation-aware (planning_budget, compiler vmem_limit) in bytes."""
    try:
        cap = int(pltpu.get_tpu_info().vmem_capacity_bytes)
    except Exception:
        cap = 64 * _MIB                      # conservative: v7x has 64 MiB / TC
    if cap >= 100 * _MIB:                    # v5e / v6e (128 MiB physical)
        limit = 100 * _MIB
    else:                                    # v7x (64 MiB per TensorCore)
        limit = 44 * _MIB
    return limit - 8 * _MIB, limit           # leave headroom for compiler scratch


def _fits(tm: int, tn: int, tk: int, single_k: bool, budget: int) -> bool:
    """Double-buffered VMEM footprint of one pipeline stage."""
    f = (2 * tm * tk * 2        # x tile, bf16, double-buffered
         + 2 * tk * tn * 2      # W tile, bf16, double-buffered
         + 2 * tm * tn * 4      # output tile, f32, double-buffered
         + 2 * tn * 4)          # bias row
    if not single_k:
        f += tm * tn * 4        # f32 accumulator scratch
    return f <= budget


# --------------------------------------------------------------------------- #
# Kernels
# --------------------------------------------------------------------------- #
def _proj_kernel(x_ref, w_ref, b_ref, o_ref, *scratch,
                 fuse_normalize: bool, single_k: bool):
    """One (tm, tn) output tile.  Grid = (M tiles, N tiles, K reduction)."""

    def finalize(acc_f32):
        y = acc_f32 + b_ref[...]
        if fuse_normalize:
            # F.normalize(p=2, dim=-1): x / max(||x||, eps)
            #   == x * rsqrt(max(||x||^2, eps^2)).  Padded embedding columns
            # are exactly zero (zero-padded W cols + zero bias pad), so the
            # norm over the padded width is unchanged.
            sumsq = jnp.sum(y * y, axis=-1, keepdims=True)
            y = y * lax.rsqrt(jnp.maximum(sumsq, EPS * EPS))
        o_ref[...] = y.astype(o_ref.dtype)

    if single_k:
        # Weight block is the full K extent: no accumulator read-modify-write.
        finalize(jnp.dot(x_ref[...], w_ref[...],
                         preferred_element_type=jnp.float32))
    else:
        acc_ref = scratch[0]
        k = pl.program_id(2)

        @pl.when(k == 0)
        def _():
            acc_ref[...] = jnp.zeros_like(acc_ref)

        acc_ref[...] += jnp.dot(x_ref[...], w_ref[...],
                                preferred_element_type=jnp.float32)

        @pl.when(k == pl.num_programs(2) - 1)
        def _():
            finalize(acc_ref[...])


def _normalize_kernel(y_ref, o_ref):
    """Row-wise L2 normalization (only used when d_embed is tiled over N)."""
    y = y_ref[...].astype(jnp.float32)
    sumsq = jnp.sum(y * y, axis=-1, keepdims=True)
    o_ref[...] = (y * lax.rsqrt(jnp.maximum(sumsq, EPS * EPS))).astype(o_ref.dtype)


# --------------------------------------------------------------------------- #
# Parameter preparation (done once, not per forward call)
# --------------------------------------------------------------------------- #
def prepare_image_encoder(weight, bias):
    """Choose tn/tk from the VMEM budget and pad/cast W, b once."""
    d_in, d_emb = weight.shape
    budget, vmem_limit = _vmem_budget()

    d_in_128 = _round_up(d_in, 128)
    d_emb_128 = _round_up(d_emb, 128)
    tm_ref = 256  # representative M tile used only for planning

    # tn: prefer the full lane-dense embedding width (fused normalize).
    tn_cands = sorted({t for t in (d_emb_128, 4096, 2048, 1024, 512, 256, 128)
                       if t <= d_emb_128}, reverse=True)
    # tk: prefer the whole K (W resident, no accumulator), else largest block.
    tk_cands = [d_in_128] + [t for t in (4096, 2048, 1024, 512, 256, 128)
                             if t < d_in_128]

    tn = tk = None
    for tn_ in tn_cands:
        for tk_ in tk_cands:
            if _fits(tm_ref, tn_, tk_, tk_ >= d_in_128, budget):
                tn, tk = tn_, tk_
                break
        if tn is not None:
            break
    if tn is None:          # degenerate fallback; always fits
        tn, tk = 128, 128

    d_emb_p = _round_up(d_emb_128, tn)
    d_in_p = _round_up(d_in, tk)

    # Cast first (bf16), then zero-pad: halves padded-copy traffic.
    w = weight.astype(jnp.bfloat16)
    if (d_in_p, d_emb_p) != (d_in, d_emb):
        w = jnp.pad(w, ((0, d_in_p - d_in), (0, d_emb_p - d_emb)))
    b = bias.astype(jnp.float32)
    if d_emb_p != d_emb:
        b = jnp.pad(b, (0, d_emb_p - d_emb))
    b = b.reshape(1, d_emb_p)

    return dict(w=w, b=b, d_in=int(d_in), d_emb=int(d_emb),
                d_in_p=int(d_in_p), d_emb_p=int(d_emb_p),
                tn=int(tn), tk=int(tk),
                budget=int(budget), vmem_limit=int(vmem_limit))


# --------------------------------------------------------------------------- #
# Forward
# --------------------------------------------------------------------------- #
def image_encoder_forward(images, params, normalize: bool = True,
                          out_dtype=jnp.float32):
    """images: (B, S, C, H, W) NCHW -> (B, S, d_embed), optionally L2-normalized.

    The dense (B, S, ...) array guarantees "all sequences have the same
    length" (the ValueError branch of the PyTorch forward cannot trigger).
    """
    B, S = images.shape[:2]
    d_in, d_emb = params["d_in"], params["d_emb"]
    d_in_p, d_emb_p = params["d_in_p"], params["d_emb_p"]
    tn, tk = params["tn"], params["tk"]
    budget, vmem_limit = params["budget"], params["vmem_limit"]

    if math.prod(images.shape[2:]) != d_in:
        raise ValueError("image shape inconsistent with prepared weight")

    M = B * S
    single_k = (tk == d_in_p)

    # --- per-call M tiling ----------------------------------------------------
    tm = None
    if M <= 1024:
        cand = _round_up(M, 16)          # bf16 packs 16 sublanes per vreg
        if _fits(cand, tn, tk, single_k, budget):
            tm = cand
    if tm is None:
        fitting = [t for t in (512, 256, 128) if _fits(t, tn, tk, single_k, budget)]
        if not fitting:
            fitting = [128]
        low_waste = [t for t in fitting if _round_up(M, t) - M <= M // 4]
        tm = max(low_waste) if low_waste else min(
            fitting, key=lambda t: _round_up(M, t) - M)
    M_p = _round_up(M, tm)

    grid_m = M_p // tm
    grid_n = d_emb_p // tn
    grid_k = d_in_p // tk
    fuse_norm = normalize and grid_n == 1

    # --- glue: flatten / cast-then-pad x --------------------------------------
    x = images.reshape(M, d_in).astype(jnp.bfloat16)
    if (M_p, d_in_p) != (M, d_in):
        x = jnp.pad(x, ((0, M_p - M), (0, d_in_p - d_in)))

    w, b = params["w"], params["b"]
    w_passes = 1 if (grid_k == 1 and grid_n == 1) else grid_m
    cost = pl.CostEstimate(
        flops=2 * M_p * d_in_p * d_emb_p,
        transcendentals=M_p if normalize else 0,
        bytes_accessed=int(x.size * 2 + w.size * 2 * w_passes
                           + M_p * d_emb_p * jnp.dtype(out_dtype).itemsize),
    )

    kernel = functools.partial(_proj_kernel,
                               fuse_normalize=fuse_norm, single_k=single_k)
    scratch = [] if single_k else [pltpu.VMEM((tm, tn), jnp.float32)]

    # TODO(synk): on v7x, profile whether ("parallel", ...) shards grid_m across
    # both TensorCores; switch to pltpu.CORE_PARALLEL on the M axis if not.
    out = pl.pallas_call(
        kernel,
        out_shape=jax.ShapeDtypeStruct((M_p, d_emb_p), out_dtype),
        grid=(grid_m, grid_n, grid_k),
        in_specs=[
            pl.BlockSpec((tm, tk), lambda i, j, k: (i, k)),    # x tile
            pl.BlockSpec((tk, tn), lambda i, j, k: (k, j)),    # W tile
            pl.BlockSpec((1, tn), lambda i, j, k: (0, j)),     # bias row
        ],
        out_specs=pl.BlockSpec((tm, tn), lambda i, j, k: (i, j)),
        scratch_shapes=scratch,
        compiler_params=pltpu.CompilerParams(
            dimension_semantics=("parallel", "parallel", "arbitrary"),
            vmem_limit_bytes=vmem_limit,
        ),
        cost_estimate=cost,
    )(x, w, b)

    # Second (cheap) normalization pass only when d_embed had to be tiled.
    if normalize and grid_n > 1:
        tm_n = tm
        while 4 * tm_n * d_emb_p * 4 > budget and tm_n % 16 == 0:
            tm_n //= 2
        out = pl.pallas_call(
            _normalize_kernel,
            out_shape=jax.ShapeDtypeStruct((M_p, d_emb_p), out_dtype),
            grid=(M_p // tm_n,),
            in_specs=[pl.BlockSpec((tm_n, d_emb_p), lambda i: (i, 0))],
            out_specs=pl.BlockSpec((tm_n, d_emb_p), lambda i: (i, 0)),
            compiler_params=pltpu.CompilerParams(
                dimension_semantics=("parallel",),
                vmem_limit_bytes=vmem_limit,
            ),
        )(out)

    if (M_p, d_emb_p) != (M, d_emb):
        out = out[:M, :d_emb]
    return out.reshape(B, S, d_emb)


# --------------------------------------------------------------------------- #
# Reference + demo
# --------------------------------------------------------------------------- #
def _reference(images, weight, bias, normalize=True):
    B, S, C, H, W = images.shape
    x = images.reshape(B * S, C * H * W).astype(jnp.float32)
    y = x @ weight + bias[None, :]
    if normalize:
        norm = jnp.sqrt(jnp.sum(y * y, axis=-1, keepdims=True))
        y = y / jnp.maximum(norm, EPS)
    return y.reshape(B, S, -1)


if __name__ == "__main__":
    # Small shapes consistent with the module: batch=2, seq=8 images per
    # sequence, each image 4x16x16 (NCHW), d_embed=32.
    B, S, C, H, W = 2, 8, 4, 16, 16
    D_EMB = 32
    D_IN = C * H * W

    key = jax.random.PRNGKey(0)
    k_img, k_w, k_b = jax.random.split(key, 3)
    images = jax.random.normal(k_img, (B, S, C, H, W), dtype=jnp.float32)
    weight = jax.random.normal(k_w, (D_IN, D_EMB), dtype=jnp.float32) * 0.02
    bias = jax.random.normal(k_b, (D_EMB,), dtype=jnp.float32) * 0.01

    # Parameters are padded / cast once (they are model constants).
    params = prepare_image_encoder(weight, bias)

    out = image_encoder_forward(images, params, normalize=True)
    out = jax.block_until_ready(out)

    ref = _reference(images, weight, bias, normalize=True)
    assert out.shape == (B, S, D_EMB)
    # bf16 matmul inputs (f32 accumulation) => small deviation vs f32 reference.
    err = float(jnp.max(jnp.abs(out - ref)))
    assert jnp.allclose(out, ref, atol=2e-2, rtol=2e-2), err
    # Normalization runs in f32 with exact rsqrt => unit-norm rows.
    assert jnp.allclose(jnp.linalg.norm(out, axis=-1), 1.0, atol=1e-4)

    # TODO(synk): the abstract _forward (real image backbone, e.g. CLIP/ResNet)
    # is represented by this single linear projection; swap in the real
    # subclass compute as needed.
    print("KERNEL_OK")
</pallas_src>

<mosaic_0001>
module attributes {stable_mosaic.version = 11 : i64} {
  func.func @_proj_kernel(%arg0: i32, %arg1: i32, %arg2: i32, %arg3: memref<16x1024xbf16, #tpu.memory_space<vmem>>, %arg4: memref<1024x128xbf16, #tpu.memory_space<vmem>>, %arg5: memref<1x128xf32, #tpu.memory_space<vmem>>, %arg6: memref<16x128xf32, #tpu.memory_space<vmem>>) attributes {dimension_semantics = [#tpu.dimension_semantics<parallel>, #tpu.dimension_semantics<parallel>, #tpu.dimension_semantics<arbitrary>], iteration_bounds = array<i64: 1, 1, 1>, scalar_prefetch = 0 : i64, scratch_operands = 0 : i64, tpu.core_type = #tpu.core_type<tc>, window_params = [{transform_indices = @transform_0, window_bounds = array<i64: 16, 1024>}, {transform_indices = @transform_1, window_bounds = array<i64: 1024, 128>}, {transform_indices = @transform_2, window_bounds = array<i64: 1, 128>}, {transform_indices = @transform_3, window_bounds = array<i64: 16, 128>}]} {
    %c0 = arith.constant 0 : index
    %c0_0 = arith.constant 0 : index
    %0 = vector.load %arg3[%c0, %c0_0] : memref<16x1024xbf16, #tpu.memory_space<vmem>>, vector<16x1024xbf16>
    %c0_1 = arith.constant 0 : index
    %c0_2 = arith.constant 0 : index
    %1 = vector.load %arg4[%c0_1, %c0_2] : memref<1024x128xbf16, #tpu.memory_space<vmem>>, vector<1024x128xbf16>
    %cst = arith.constant dense<0.000000e+00> : vector<16x128xf32>
    %2 = tpu.matmul %0, %1, %cst {dimension_numbers = #tpu.dot_dimension_numbers<[1], [0], [0], [1], [0, 0, 1, 1], [], []>} : vector<16x1024xbf16>, vector<1024x128xbf16>, vector<16x128xf32> -> vector<16x128xf32>
    %c0_3 = arith.constant 0 : index
    %c0_4 = arith.constant 0 : index
    %3 = vector.load %arg5[%c0_3, %c0_4] : memref<1x128xf32, #tpu.memory_space<vmem>>, vector<1x128xf32>
    %4 = vector.broadcast %3 : vector<1x128xf32> to vector<16x128xf32>
    %5 = arith.addf %2, %4 : vector<16x128xf32>
    %6 = arith.mulf %5, %5 : vector<16x128xf32>
    %cst_5 = arith.constant dense<0.000000e+00> : vector<16xf32>
    %7 = vector.multi_reduction <add>, %6, %cst_5 [1] : vector<16x128xf32> to vector<16xf32>
    %8 = vector.shape_cast %7 : vector<16xf32> to vector<16x1xf32>
    %cst_6 = arith.constant 1.000000e-24 : f32
    %9 = vector.broadcast %cst_6 : f32 to vector<16x1xf32>
    %10 = arith.maximumf %8, %9 : vector<16x1xf32>
    %11 = math.rsqrt %10 : vector<16x1xf32>
    %12 = vector.broadcast %11 : vector<16x1xf32> to vector<16x128xf32>
    %13 = arith.mulf %5, %12 : vector<16x128xf32>
    %c0_7 = arith.constant 0 : index
    %c0_8 = arith.constant 0 : index
    %14 = vector.load %arg6[%c0_7, %c0_8] : memref<16x128xf32, #tpu.memory_space<vmem>>, vector<16x128xf32>
    tpu.vector_store %arg6[%c0_7, %c0_8], %13 {strides = array<i32>} : memref<16x128xf32, #tpu.memory_space<vmem>>, vector<16x128xf32>,
    return
  }
  func.func @transform_0(%arg0: i32, %arg1: i32, %arg2: i32) -> (i32, i32) {
    %c0_i32 = arith.constant 0 : i32
    return %arg0, %arg2 : i32, i32
  }
  func.func @transform_1(%arg0: i32, %arg1: i32, %arg2: i32) -> (i32, i32) {
    %c0_i32 = arith.constant 0 : i32
    return %arg2, %arg1 : i32, i32
  }
  func.func @transform_2(%arg0: i32, %arg1: i32, %arg2: i32) -> (i32, i32) {
    %c0_i32 = arith.constant 0 : i32
    %c0_i32_0 = arith.constant 0 : i32
    return %c0_i32, %arg1 : i32, i32
  }
  func.func @transform_3(%arg0: i32, %arg1: i32, %arg2: i32) -> (i32, i32) {
    %c0_i32 = arith.constant 0 : i32
    return %arg0, %arg1 : i32, i32
  }
}

</mosaic_0001>

<llo_original>
// kernel: tpu_custom_call.1
$region0: #{tpu_custom_call.1}
  #allocation0 [shape = 'u32[]', space=smem, size = 0x4, offset = 0x4, fixed_abs, tag = 'smem constant byte address 0x4 - core index']
  #allocation1 [shape = 'u32[144,128]{1,0:T(1,128)}', space=vmem, size = 0x12000, scoped, tag = 'internal scratch']
  %s0 = inlined_call_operand.hbm [shape: bf16[16,1024], index: 0, kind: input, shape index: {}]
  %s1 = inlined_call_operand.hbm [shape: bf16[1024,128], index: 1, kind: input, shape index: {}]
  %s2 = inlined_call_operand.vmem [shape: f32[1,128], index: 2, kind: input, shape index: {}]
  %s3 = inlined_call_operand.hbm [shape: f32[16,128], index: 3, kind: output, shape index: {}]
  %s4 = sld [smem:[#allocation0]]
  $region30: #{tpu_custom_call.1} parent=0
    _
  %s6 = ssub.s32 1, %s4
  %s7 = scalar_select 0, %s6, %s4
  $region1: #{tpu_custom_call.1} parent=0
    #allocation2 [shape = 'u8[32768]{0}', space=vmem, size = 0x8000, scoped, tag = 'input window, operand 0, single buffered']
    #allocation3 [shape = 's32[1]{0}', space=sflag, size = 0x4, scoped, tag = 'scoped memory for tpu_custom_call.1']
    #allocation4 [shape = 's32[1]{0}', space=sflag, size = 0x4, scoped, tag = 'scoped memory for tpu_custom_call.1']
    #allocation5 [shape = 'u8[262144]{0}', space=vmem, size = 0x40000, scoped, tag = 'input window, operand 1, single buffered']
    #allocation6 [shape = 's32[1]{0}', space=sflag, size = 0x4, scoped, tag = 'scoped memory for tpu_custom_call.1']
    #allocation7 [shape = 'u8[8192]{0}', space=vmem, size = 0x2000, scoped, tag = 'output window, operand 0, single buffered']
    %8 = vsyncpa [#allocation3], 0
    %9 = vsyncpa [#allocation6], 0
    %10 = vsyncpa [#allocation4], 0
    // Predicated region
    $region2: #{tpu_custom_call.1} parent=1 // pred_check
      _
    $region3: #{tpu_custom_call.1} parent=1 // pred_check_branch
      %12 = sbr.rel (0) target = $region5
    $region4: #{tpu_custom_call.1} parent=1 // pred_region
      %s14 = ssub.s32 1024, 1024
      %15 = vsyncadd [#allocation3], %s14
      %s16 = sshll.u32 [#allocation2], 4
      %s17 = int_to_ptr.vmem [resolvable:$true] %s16
      %22 = dma.hbm_to_vmem [thread:$0]  %s0, 1024, %s17, [#allocation3], 512, 512, 32
    $region5: #{tpu_custom_call.1} parent=1 // pred_fallthru
      _
    // Predicated region
    $region6: #{tpu_custom_call.1} parent=1 // pred_check
      _
    $region7: #{tpu_custom_call.1} parent=1 // pred_check_branch
      %24 = sbr.rel (0) target = $region9
    $region8: #{tpu_custom_call.1} parent=1 // pred_region
      %s26 = ssub.s32 8192, 8192
      %27 = vsyncadd [#allocation6], %s26
      %s28 = sshll.u32 [#allocation5], 4
      %s29 = int_to_ptr.vmem [resolvable:$true] %s28
      %34 = dma.hbm_to_vmem [thread:$0]  %s1, 8192, %s29, [#allocation6], 64, 64, 4
    $region9: #{tpu_custom_call.1} parent=1 // pred_fallthru
      _
    // Predicated region
    $region10: #{tpu_custom_call.1} parent=1 // pred_check
      _
    $region11: #{tpu_custom_call.1} parent=1 // pred_check_branch
      %36 = sbr.rel (0) target = $region13
    $region12: #{tpu_custom_call.1} parent=1 // pred_region
      _
    $region13: #{tpu_custom_call.1} parent=1 // pred_fallthru
      _
    // Predicated region
    $region14: #{tpu_custom_call.1} parent=1 // pred_check
      _
    $region15: #{tpu_custom_call.1} parent=1 // pred_check_branch
      %38 = sbr.rel (0) target = $region17
    $region16: #{tpu_custom_call.1} parent=1 // pred_region
      %39 = dma.done [#allocation3], 1024
    $region17: #{tpu_custom_call.1} parent=1 // pred_fallthru
      _
    // Predicated region
    $region18: #{tpu_custom_call.1} parent=1 // pred_check
      _
    $region19: #{tpu_custom_call.1} parent=1 // pred_check_branch
      %41 = sbr.rel (0) target = $region21
    $region20: #{tpu_custom_call.1} parent=1 // pred_region
      %42 = dma.done [#allocation6], 8192
    $region21: #{tpu_custom_call.1} parent=1 // pred_fallthru
      _
    %v44 = vld [vmem:[#allocation2] sm:$0xff]
    %v45 = vld [vmem:[#allocation2 + $0x8] sm:$0xff]
    %v46 = vld [vmem:[#allocation2 + $0x10] sm:$0xff]
    %v47 = vld [vmem:[#allocation2 + $0x18] sm:$0xff]
    %v48 = vld [vmem:[#allocation2 + $0x20] sm:$0xff]
    %v49 = vld [vmem:[#allocation2 + $0x28] sm:$0xff]
    %v50 = vld [vmem:[#allocation2 + $0x30] sm:$0xff]
    %v51 = vld [vmem:[#allocation2 + $0x38] sm:$0xff]
    %v52 = vld [vmem:[#allocation5] sm:$0xf]
    %v53 = vld [vmem:[#allocation5 + $0x4] sm:$0xf]
    %v54 = vld [vmem:[#allocation5 + $0x8] sm:$0xf]
    %v55 = vld [vmem:[#allocation5 + $0xc] sm:$0xf]
    %v56 = vld [vmem:[#allocation5 + $0x10] sm:$0xf]
    %v57 = vld [vmem:[#allocation5 + $0x14] sm:$0xf]
    %v58 = vld [vmem:[#allocation5 + $0x18] sm:$0xf]
    %v59 = vld [vmem:[#allocation5 + $0x1c] sm:$0xf]
    %v60 = vld [vmem:[#allocation5 + $0x20] sm:$0xf]
    %v61 = vld [vmem:[#allocation5 + $0x24] sm:$0xf]
    %v62 = vld [vmem:[#allocation5 + $0x28] sm:$0xf]
    %v63 = vld [vmem:[#allocation5 + $0x2c] sm:$0xf]
    %v64 = vld [vmem:[#allocation5 + $0x30] sm:$0xf]
    %v65 = vld [vmem:[#allocation5 + $0x34] sm:$0xf]
    %v66 = vld [vmem:[#allocation5 + $0x38] sm:$0xf]
    %v67 = vld [vmem:[#allocation5 + $0x3c] sm:$0xf]
    %v68 = vld [vmem:[#allocation5 + $0x40] sm:$0xf]
    %v69 = vld [vmem:[#allocation5 + $0x44] sm:$0xf]
    %v70 = vld [vmem:[#allocation5 + $0x48] sm:$0xf]
    %v71 = vld [vmem:[#allocation5 + $0x4c] sm:$0xf]
    %v72 = vld [vmem:[#allocation5 + $0x50] sm:$0xf]
    %v73 = vld [vmem:[#allocation5 + $0x54] sm:$0xf]
    %v74 = vld [vmem:[#allocation5 + $0x58] sm:$0xf]
    %v75 = vld [vmem:[#allocation5 + $0x5c] sm:$0xf]
    %v76 = vld [vmem:[#allocation5 + $0x60] sm:$0xf]
    %v77 = vld [vmem:[#allocation5 + $0x64] sm:$0xf]
    %v78 = vld [vmem:[#allocation5 + $0x68] sm:$0xf]
    %v79 = vld [vmem:[#allocation5 + $0x6c] sm:$0xf]
    %v80 = vld [vmem:[#allocation5 + $0x70] sm:$0xf]
    %v81 = vld [vmem:[#allocation5 + $0x74] sm:$0xf]
    %v82 = vld [vmem:[#allocation5 + $0x78] sm:$0xf]
    %v83 = vld [vmem:[#allocation5 + $0x7c] sm:$0xf]
    %v84 = vld [vmem:[#allocation5 + $0x80] sm:$0xf]
    %v85 = vld [vmem:[#allocation5 + $0x84] sm:$0xf]
    %v86 = vld [vmem:[#allocation5 + $0x88] sm:$0xf]
    %v87 = vld [vmem:[#allocation5 + $0x8c] sm:$0xf]
    %v88 = vld [vmem:[#allocation5 + $0x90] sm:$0xf]
    %v89 = vld [vmem:[#allocation5 + $0x94] sm:$0xf]
    %v90 = vld [vmem:[#allocation5 + $0x98] sm:$0xf]
    %v91 = vld [vmem:[#allocation5 + $0x9c] sm:$0xf]
    %v92 = vld [vmem:[#allocation5 + $0xa0] sm:$0xf]
    %v93 = vld [vmem:[#allocation5 + $0xa4] sm:$0xf]
    %v94 = vld [vmem:[#allocation5 + $0xa8] sm:$0xf]
    %v95 = vld [vmem:[#allocation5 + $0xac] sm:$0xf]
    %v96 = vld [vmem:[#allocation5 + $0xb0] sm:$0xf]
    %v97 = vld [vmem:[#allocation5 + $0xb4] sm:$0xf]
    %v98 = vld [vmem:[#allocation5 + $0xb8] sm:$0xf]
    %v99 = vld [vmem:[#allocation5 + $0xbc] sm:$0xf]
    %v100 = vld [vmem:[#allocation5 + $0xc0] sm:$0xf]
    %v101 = vld [vmem:[#allocation5 + $0xc4] sm:$0xf]
    %v102 = vld [vmem:[#allocation5 + $0xc8] sm:$0xf]
    %v103 = vld [vmem:[#allocation5 + $0xcc] sm:$0xf]
    %v104 = vld [vmem:[#allocation5 + $0xd0] sm:$0xf]
    %v105 = vld [vmem:[#allocation5 + $0xd4] sm:$0xf]
    %v106 = vld [vmem:[#allocation5 + $0xd8] sm:$0xf]
    %v107 = vld [vmem:[#allocation5 + $0xdc] sm:$0xf]
    %v108 = vld [vmem:[#allocation5 + $0xe0] sm:$0xf]
    %v109 = vld [vmem:[#allocation5 + $0xe4] sm:$0xf]
    %v110 = vld [vmem:[#allocation5 + $0xe8] sm:$0xf]
    %v111 = vld [vmem:[#allocation5 + $0xec] sm:$0xf]
    %v112 = vld [vmem:[#allocation5 + $0xf0] sm:$0xf]
    %v113 = vld [vmem:[#allocation5 + $0xf4] sm:$0xf]
    %v114 = vld [vmem:[#allocation5 + $0xf8] sm:$0xf]
    %v115 = vld [vmem:[#allocation5 + $0xfc] sm:$0xf]
    %v116 = vld [vmem:[#allocation5 + $0x100] sm:$0xf]
    %v117 = vld [vmem:[#allocation5 + $0x104] sm:$0xf]
    %v118 = vld [vmem:[#allocation5 + $0x108] sm:$0xf]
    %v119 = vld [vmem:[#allocation5 + $0x10c] sm:$0xf]
    %v120 = vld [vmem:[#allocation5 + $0x110] sm:$0xf]
    %v121 = vld [vmem:[#allocation5 + $0x114] sm:$0xf]
    %v122 = vld [vmem:[#allocation5 + $0x118] sm:$0xf]
    %v123 = vld [vmem:[#allocation5 + $0x11c] sm:$0xf]
    %v124 = vld [vmem:[#allocation5 + $0x120] sm:$0xf]
    %v125 = vld [vmem:[#allocation5 + $0x124] sm:$0xf]
    %v126 = vld [vmem:[#allocation5 + $0x128] sm:$0xf]
    %v127 = vld [vmem:[#allocation5 + $0x12c] sm:$0xf]
    %v128 = vld [vmem:[#allocation5 + $0x130] sm:$0xf]
    %v129 = vld [vmem:[#allocation5 + $0x134] sm:$0xf]
    %v130 = vld [vmem:[#allocation5 + $0x138] sm:$0xf]
    %v131 = vld [vmem:[#allocation5 + $0x13c] sm:$0xf]
    %v132 = vld [vmem:[#allocation5 + $0x140] sm:$0xf]
    %v133 = vld [vmem:[#allocation5 + $0x144] sm:$0xf]
    %v134 = vld [vmem:[#allocation5 + $0x148] sm:$0xf]
    %v135 = vld [vmem:[#allocation5 + $0x14c] sm:$0xf]
    %v136 = vld [vmem:[#allocation5 + $0x150] sm:$0xf]
    %v137 = vld [vmem:[#allocation5 + $0x154] sm:$0xf]
    %v138 = vld [vmem:[#allocation5 + $0x158] sm:$0xf]
    %v139 = vld [vmem:[#allocation5 + $0x15c] sm:$0xf]
    %v140 = vld [vmem:[#allocation5 + $0x160] sm:$0xf]
    %v141 = vld [vmem:[#allocation5 + $0x164] sm:$0xf]
    %v142 = vld [vmem:[#allocation5 + $0x168] sm:$0xf]
    %v143 = vld [vmem:[#allocation5 + $0x16c] sm:$0xf]
    %v144 = vld [vmem:[#allocation5 + $0x170] sm:$0xf]
    %v145 = vld [vmem:[#allocation5 + $0x174] sm:$0xf]
    %v146 = vld [vmem:[#allocation5 + $0x178] sm:$0xf]
    %v147 = vld [vmem:[#allocation5 + $0x17c] sm:$0xf]
    %v148 = vld [vmem:[#allocation5 + $0x180] sm:$0xf]
    %v149 = vld [vmem:[#allocation5 + $0x184] sm:$0xf]
    %v150 = vld [vmem:[#allocation5 + $0x188] sm:$0xf]
    %v151 = vld [vmem:[#allocation5 + $0x18c] sm:$0xf]
    %v152 = vld [vmem:[#allocation5 + $0x190] sm:$0xf]
    %v153 = vld [vmem:[#allocation5 + $0x194] sm:$0xf]
    %v154 = vld [vmem:[#allocation5 + $0x198] sm:$0xf]
    %v155 = vld [vmem:[#allocation5 + $0x19c] sm:$0xf]
    %v156 = vld [vmem:[#allocation5 + $0x1a0] sm:$0xf]
    %v157 = vld [vmem:[#allocation5 + $0x1a4] sm:$0xf]
    %v158 = vld [vmem:[#allocation5 + $0x1a8] sm:$0xf]
    %v159 = vld [vmem:[#allocation5 + $0x1ac] sm:$0xf]
    %v160 = vld [vmem:[#allocation5 + $0x1b0] sm:$0xf]
    %v161 = vld [vmem:[#allocation5 + $0x1b4] sm:$0xf]
    %v162 = vld [vmem:[#allocation5 + $0x1b8] sm:$0xf]
    %v163 = vld [vmem:[#allocation5 + $0x1bc] sm:$0xf]
    %v164 = vld [vmem:[#allocation5 + $0x1c0] sm:$0xf]
    %v165 = vld [vmem:[#allocation5 + $0x1c4] sm:$0xf]
    %v166 = vld [vmem:[#allocation5 + $0x1c8] sm:$0xf]
    %v167 = vld [vmem:[#allocation5 + $0x1cc] sm:$0xf]
    %v168 = vld [vmem:[#allocation5 + $0x1d0] sm:$0xf]
    %v169 = vld [vmem:[#allocation5 + $0x1d4] sm:$0xf]
    %v170 = vld [vmem:[#allocation5 + $0x1d8] sm:$0xf]
    %v171 = vld [vmem:[#allocation5 + $0x1dc] sm:$0xf]
    %v172 = vld [vmem:[#allocation5 + $0x1e0] sm:$0xf]
    %v173 = vld [vmem:[#allocation5 + $0x1e4] sm:$0xf]
    %v174 = vld [vmem:[#allocation5 + $0x1e8] sm:$0xf]
    %v175 = vld [vmem:[#allocation5 + $0x1ec] sm:$0xf]
    %v176 = vld [vmem:[#allocation5 + $0x1f0] sm:$0xf]
    %v177 = vld [vmem:[#allocation5 + $0x1f4] sm:$0xf]
    %v178 = vld [vmem:[#allocation5 + $0x1f8] sm:$0xf]
    %v179 = vld [vmem:[#allocation5 + $0x1fc] sm:$0xf]
    %v180 = vld [vmem:[%s2] sm:$0x1]
    %v182 = vlaneseq
    %v183 = vshrl.u32 %v182, 7
    %v184 = vsub.s32 0, %v183
    %v185 = vrot.slane %v180, %v184
    %v195 = vunpack.c.l.b16 %v44
    %v196 = vunpack.c.h.b16 %v44
    %v197 = vunpack.c.l.b16 %v45
    %v198 = vunpack.c.h.b16 %v45
    %v199 = vunpack.c.l.b16 %v46
    %v200 = vunpack.c.h.b16 %v46
    %v201 = vunpack.c.l.b16 %v47
    %v202 = vunpack.c.h.b16 %v47
    %v203 = vunpack.c.l.b16 %v48
    %v204 = vunpack.c.h.b16 %v48
    %v205 = vunpack.c.l.b16 %v49
    %v206 = vunpack.c.h.b16 %v49
    %v207 = vunpack.c.l.b16 %v50
    %v208 = vunpack.c.h.b16 %v50
    %v209 = vunpack.c.l.b16 %v51
    %v210 = vunpack.c.h.b16 %v51
    %v211 = vpack.c.b16 %v203, %v195
    %v212 = vpack.c.b16 %v204, %v196
    %v213 = vpack.c.b16 %v205, %v197
    %v214 = vpack.c.b16 %v206, %v198
    %v215 = vpack.c.b16 %v207, %v199
    %v216 = vpack.c.b16 %v208, %v200
    %v217 = vpack.c.b16 %v209, %v201
    %v218 = vpack.c.b16 %v210, %v202
    %v355 = vunpack.c.l.b16 %v52
    %v356 = vunpack.c.l.b16 %v53
    %v357 = vunpack.c.l.b16 %v54
    %v358 = vunpack.c.l.b16 %v55
    %v359 = vunpack.c.l.b16 %v56
    %v360 = vunpack.c.l.b16 %v57
    %v361 = vunpack.c.l.b16 %v58
    %v362 = vunpack.c.l.b16 %v59
    %v363 = vunpack.c.l.b16 %v60
    %v364 = vunpack.c.l.b16 %v61
    %v365 = vunpack.c.l.b16 %v62
    %v366 = vunpack.c.l.b16 %v63
    %v367 = vunpack.c.l.b16 %v64
    %v368 = vunpack.c.l.b16 %v65
    %v369 = vunpack.c.l.b16 %v66
    %v370 = vunpack.c.l.b16 %v67
    %v371 = vunpack.c.l.b16 %v68
    %v372 = vunpack.c.l.b16 %v69
    %v373 = vunpack.c.l.b16 %v70
    %v374 = vunpack.c.l.b16 %v71
    %v375 = vunpack.c.l.b16 %v72
    %v376 = vunpack.c.l.b16 %v73
    %v377 = vunpack.c.l.b16 %v74
    %v378 = vunpack.c.l.b16 %v75
    %v379 = vunpack.c.l.b16 %v76
    %v380 = vunpack.c.l.b16 %v77
    %v381 = vunpack.c.l.b16 %v78
    %v382 = vunpack.c.l.b16 %v79
    %v383 = vunpack.c.l.b16 %v80
    %v384 = vunpack.c.l.b16 %v81
    %v385 = vunpack.c.l.b16 %v82
    %v386 = vunpack.c.l.b16 %v83
    %v387 = vunpack.c.l.b16 %v84
    %v388 = vunpack.c.l.b16 %v85
    %v389 = vunpack.c.l.b16 %v86
    %v390 = vunpack.c.l.b16 %v87
    %v391 = vunpack.c.l.b16 %v88
    %v392 = vunpack.c.l.b16 %v89
    %v393 = vunpack.c.l.b16 %v90
    %v394 = vunpack.c.l.b16 %v91
    %v395 = vunpack.c.l.b16 %v92
    %v396 = vunpack.c.l.b16 %v93
    %v397 = vunpack.c.l.b16 %v94
    %v398 = vunpack.c.l.b16 %v95
    %v399 = vunpack.c.l.b16 %v96
    %v400 = vunpack.c.l.b16 %v97
    %v401 = vunpack.c.l.b16 %v98
    %v402 = vunpack.c.l.b16 %v99
    %v403 = vunpack.c.l.b16 %v100
    %v404 = vunpack.c.l.b16 %v101
    %v405 = vunpack.c.l.b16 %v102
    %v406 = vunpack.c.l.b16 %v103
    %v407 = vunpack.c.l.b16 %v104
    %v408 = vunpack.c.l.b16 %v105
    %v409 = vunpack.c.l.b16 %v106
    %v410 = vunpack.c.l.b16 %v107
    %v411 = vunpack.c.l.b16 %v108
    %v412 = vunpack.c.l.b16 %v109
    %v413 = vunpack.c.l.b16 %v110
    %v414 = vunpack.c.l.b16 %v111
    %v415 = vunpack.c.l.b16 %v112
    %v416 = vunpack.c.l.b16 %v113
    %v417 = vunpack.c.l.b16 %v114
    %v418 = vunpack.c.l.b16 %v115
    %v419 = vunpack.c.l.b16 %v116
    %v420 = vunpack.c.l.b16 %v117
    %v421 = vunpack.c.l.b16 %v118
    %v422 = vunpack.c.l.b16 %v119
    %v423 = vunpack.c.l.b16 %v120
    %v424 = vunpack.c.l.b16 %v121
    %v425 = vunpack.c.l.b16 %v122
    %v426 = vunpack.c.l.b16 %v123
    %v427 = vunpack.c.l.b16 %v124
    %v428 = vunpack.c.l.b16 %v125
    %v429 = vunpack.c.l.b16 %v126
    %v430 = vunpack.c.l.b16 %v127
    %v431 = vunpack.c.l.b16 %v128
    %v432 = vunpack.c.l.b16 %v129
    %v433 = vunpack.c.l.b16 %v130
    %v434 = vunpack.c.l.b16 %v131
    %v435 = vunpack.c.l.b16 %v132
    %v436 = vunpack.c.l.b16 %v133
    %v437 = vunpack.c.l.b16 %v134
    %v438 = vunpack.c.l.b16 %v135
    %v439 = vunpack.c.l.b16 %v136
    %v440 = vunpack.c.l.b16 %v137
    %v441 = vunpack.c.l.b16 %v138
    %v442 = vunpack.c.l.b16 %v139
    %v443 = vunpack.c.l.b16 %v140
    %v444 = vunpack.c.l.b16 %v141
    %v445 = vunpack.c.l.b16 %v142
    %v446 = vunpack.c.l.b16 %v143
    %v447 = vunpack.c.l.b16 %v144
    %v448 = vunpack.c.l.b16 %v145
    %v449 = vunpack.c.l.b16 %v146
    %v450 = vunpack.c.l.b16 %v147
    %v451 = vunpack.c.l.b16 %v148
    %v452 = vunpack.c.l.b16 %v149
    %v453 = vunpack.c.l.b16 %v150
    %v454 = vunpack.c.l.b16 %v151
    %v455 = vunpack.c.l.b16 %v152
    %v456 = vunpack.c.l.b16 %v153
    %v457 = vunpack.c.l.b16 %v154
    %v458 = vunpack.c.l.b16 %v155
    %v459 = vunpack.c.l.b16 %v156
    %v460 = vunpack.c.l.b16 %v157
    %v461 = vunpack.c.l.b16 %v158
    %v462 = vunpack.c.l.b16 %v159
    %v463 = vunpack.c.l.b16 %v160
    %v464 = vunpack.c.l.b16 %v161
    %v465 = vunpack.c.l.b16 %v162
    %v466 = vunpack.c.l.b16 %v163
    %v467 = vunpack.c.l.b16 %v164
    %v468 = vunpack.c.l.b16 %v165
    %v469 = vunpack.c.l.b16 %v166
    %v470 = vunpack.c.l.b16 %v167
    %v471 = vunpack.c.l.b16 %v168
    %v472 = vunpack.c.l.b16 %v169
    %v473 = vunpack.c.l.b16 %v170
    %v474 = vunpack.c.l.b16 %v171
    %v475 = vunpack.c.l.b16 %v172
    %v476 = vunpack.c.l.b16 %v173
    %v477 = vunpack.c.l.b16 %v174
    %v478 = vunpack.c.l.b16 %v175
    %v479 = vunpack.c.l.b16 %v176
    %v480 = vunpack.c.l.b16 %v177
    %v481 = vunpack.c.l.b16 %v178
    %v482 = vunpack.c.l.b16 %v179
    %v483 = vpack.c.b16 %v356, %v355
    %v484 = vpack.c.b16 %v358, %v357
    %v485 = vpack.c.b16 %v360, %v359
    %v486 = vpack.c.b16 %v362, %v361
    %v487 = vpack.c.b16 %v364, %v363
    %v488 = vpack.c.b16 %v366, %v365
    %v489 = vpack.c.b16 %v368, %v367
    %v490 = vpack.c.b16 %v370, %v369
    %v491 = vpack.c.b16 %v372, %v371
    %v492 = vpack.c.b16 %v374, %v373
    %v493 = vpack.c.b16 %v376, %v375
    %v494 = vpack.c.b16 %v378, %v377
    %v495 = vpack.c.b16 %v380, %v379
    %v496 = vpack.c.b16 %v382, %v381
    %v497 = vpack.c.b16 %v384, %v383
    %v498 = vpack.c.b16 %v386, %v385
    %v499 = vpack.c.b16 %v388, %v387
    %v500 = vpack.c.b16 %v390, %v389
    %v501 = vpack.c.b16 %v392, %v391
    %v502 = vpack.c.b16 %v394, %v393
    %v503 = vpack.c.b16 %v396, %v395
    %v504 = vpack.c.b16 %v398, %v397
    %v505 = vpack.c.b16 %v400, %v399
    %v506 = vpack.c.b16 %v402, %v401
    %v507 = vpack.c.b16 %v404, %v403
    %v508 = vpack.c.b16 %v406, %v405
    %v509 = vpack.c.b16 %v408, %v407
    %v510 = vpack.c.b16 %v410, %v409
    %v511 = vpack.c.b16 %v412, %v411
    %v512 = vpack.c.b16 %v414, %v413
    %v513 = vpack.c.b16 %v416, %v415
    %v514 = vpack.c.b16 %v418, %v417
    %v515 = vpack.c.b16 %v420, %v419
    %v516 = vpack.c.b16 %v422, %v421
    %v517 = vpack.c.b16 %v424, %v423
    %v518 = vpack.c.b16 %v426, %v425
    %v519 = vpack.c.b16 %v428, %v427
    %v520 = vpack.c.b16 %v430, %v429
    %v521 = vpack.c.b16 %v432, %v431
    %v522 = vpack.c.b16 %v434, %v433
    %v523 = vpack.c.b16 %v436, %v435
    %v524 = vpack.c.b16 %v438, %v437
    %v525 = vpack.c.b16 %v440, %v439
    %v526 = vpack.c.b16 %v442, %v441
    %v527 = vpack.c.b16 %v444, %v443
    %v528 = vpack.c.b16 %v446, %v445
    %v529 = vpack.c.b16 %v448, %v447
    %v530 = vpack.c.b16 %v450, %v449
    %v531 = vpack.c.b16 %v452, %v451
    %v532 = vpack.c.b16 %v454, %v453
    %v533 = vpack.c.b16 %v456, %v455
    %v534 = vpack.c.b16 %v458, %v457
    %v535 = vpack.c.b16 %v460, %v459
    %v536 = vpack.c.b16 %v462, %v461
    %v537 = vpack.c.b16 %v464, %v463
    %v538 = vpack.c.b16 %v466, %v465
    %v539 = vpack.c.b16 %v468, %v467
    %v540 = vpack.c.b16 %v470, %v469
    %v541 = vpack.c.b16 %v472, %v471
    %v542 = vpack.c.b16 %v474, %v473
    %v543 = vpack.c.b16 %v476, %v475
    %v544 = vpack.c.b16 %v478, %v477
    %v545 = vpack.c.b16 %v480, %v479
    %v546 = vpack.c.b16 %v482, %v481
    %611 = vmatprep.subr.bf16.mxu0 0
    %612 = vmatpush1.bf16.msra.mxu0 %v490
    %613 = vmatprep.subr.bf16.mxu0 0
    %614 = vmatpush1.bf16.msra.mxu0 %v489
    %615 = vmatprep.subr.bf16.mxu0 0
    %616 = vmatpush1.bf16.msra.mxu0 %v488
    %617 = vmatprep.subr.bf16.mxu0 0
    %618 = vmatpush1.bf16.msra.mxu0 %v487
    %619 = vmatprep.subr.bf16.mxu0 0
    %620 = vmatpush1.bf16.msra.mxu0 %v486
    %621 = vmatprep.subr.bf16.mxu0 0
    %622 = vmatpush1.bf16.msra.mxu0 %v485
    %623 = vmatprep.subr.bf16.mxu0 0
    %624 = vmatpush1.bf16.msra.mxu0 %v484
    %625 = vmatprep.subr.bf16.mxu0 0
    %626 = vmatpush1.bf16.msra.mxu0 %v483
    %627 = vmatprep.subr.bf16.mxu0 0
    %628 = vmatpush2.bf16.msra.mxu0 %v498
    %629 = vmatprep.subr.bf16.mxu0 0
    %630 = vmatpush2.bf16.msra.mxu0 %v497
    %631 = vmatprep.subr.bf16.mxu0 0
    %632 = vmatpush2.bf16.msra.mxu0 %v496
    %633 = vmatprep.subr.bf16.mxu0 0
    %634 = vmatpush2.bf16.msra.mxu0 %v495
    %635 = vmatprep.subr.bf16.mxu0 0
    %636 = vmatpush2.bf16.msra.mxu0 %v494
    %637 = vmatprep.subr.bf16.mxu0 0
    %638 = vmatpush2.bf16.msra.mxu0 %v493
    %639 = vmatprep.subr.bf16.mxu0 0
    %640 = vmatpush2.bf16.msra.mxu0 %v492
    %641 = vmatprep.subr.bf16.mxu0 0
    %642 = vmatpush2.bf16.msra.mxu0 %v491
    %643 = vmatprep.mubr.bf16.mxu0 %v212
    %644 = vmatmul.mubr.bf16.gmra.mxu0 %v211
    %v645 = vpop.f32.mrf.mxu0
    %v646 = vadd.f32 %v185, %v645
    %v647 = vpop.f32.mrf.mxu0
    %v648 = vpop.f32.mrf.mxu0
    %v649 = vadd.f32 %v185, %v648
    %v650 = vpop.f32.mrf.mxu0
    %651 = vdwg.mxu0
    %652 = vmatprep.subr.bf16.mxu0 0
    %653 = vmatpush1.bf16.msra.mxu0 %v506
    %654 = vmatprep.subr.bf16.mxu0 0
    %655 = vmatpush1.bf16.msra.mxu0 %v505
    %656 = vmatprep.subr.bf16.mxu0 0
    %657 = vmatpush1.bf16.msra.mxu0 %v504
    %658 = vmatprep.subr.bf16.mxu0 0
    %659 = vmatpush1.bf16.msra.mxu0 %v503
    %660 = vmatprep.subr.bf16.mxu0 0
    %661 = vmatpush1.bf16.msra.mxu0 %v502
    %662 = vmatprep.subr.bf16.mxu0 0
    %663 = vmatpush1.bf16.msra.mxu0 %v501
    %664 = vmatprep.subr.bf16.mxu0 0
    %665 = vmatpush1.bf16.msra.mxu0 %v500
    %666 = vmatprep.subr.bf16.mxu0 0
    %667 = vmatpush1.bf16.msra.mxu0 %v499
    %668 = vmatprep.subr.bf16.mxu0 0
    %669 = vmatpush2.bf16.msra.mxu0 %v514
    %670 = vmatprep.subr.bf16.mxu0 0
    %671 = vmatpush2.bf16.msra.mxu0 %v513
    %672 = vmatprep.subr.bf16.mxu0 0
    %673 = vmatpush2.bf16.msra.mxu0 %v512
    %674 = vmatprep.subr.bf16.mxu0 0
    %675 = vmatpush2.bf16.msra.mxu0 %v511
    %676 = vmatprep.subr.bf16.mxu0 0
    %677 = vmatpush2.bf16.msra.mxu0 %v510
    %678 = vmatprep.subr.bf16.mxu0 0
    %679 = vmatpush2.bf16.msra.mxu0 %v509
    %680 = vmatprep.subr.bf16.mxu0 0
    %681 = vmatpush2.bf16.msra.mxu0 %v508
    %682 = vmatprep.subr.bf16.mxu0 0
    %683 = vmatpush2.bf16.msra.mxu0 %v507
    %684 = vmatprep.mubr.bf16.mxu0 %v214
    %685 = vmatmul.mubr.bf16.gmra.mxu0 %v213
    %v686 = vpop.f32.mrf.mxu0
    %v687 = vadd.f32 %v646, %v686
    %v688 = vpop.f32.mrf.mxu0
    %v689 = vpop.f32.mrf.mxu0
    %v690 = vadd.f32 %v649, %v689
    %v691 = vpop.f32.mrf.mxu0
    %692 = vdwg.mxu0
    %693 = vmatprep.subr.bf16.mxu0 0
    %694 = vmatpush1.bf16.msra.mxu0 %v522
    %695 = vmatprep.subr.bf16.mxu0 0
    %696 = vmatpush1.bf16.msra.mxu0 %v521
    %697 = vmatprep.subr.bf16.mxu0 0
    %698 = vmatpush1.bf16.msra.mxu0 %v520
    %699 = vmatprep.subr.bf16.mxu0 0
    %700 = vmatpush1.bf16.msra.mxu0 %v519
    %701 = vmatprep.subr.bf16.mxu0 0
    %702 = vmatpush1.bf16.msra.mxu0 %v518
    %703 = vmatprep.subr.bf16.mxu0 0
    %704 = vmatpush1.bf16.msra.mxu0 %v517
    %705 = vmatprep.subr.bf16.mxu0 0
    %706 = vmatpush1.bf16.msra.mxu0 %v516
    %707 = vmatprep.subr.bf16.mxu0 0
    %708 = vmatpush1.bf16.msra.mxu0 %v515
    %709 = vmatprep.subr.bf16.mxu0 0
    %710 = vmatpush2.bf16.msra.mxu0 %v530
    %711 = vmatprep.subr.bf16.mxu0 0
    %712 = vmatpush2.bf16.msra.mxu0 %v529
    %713 = vmatprep.subr.bf16.mxu0 0
    %714 = vmatpush2.bf16.msra.mxu0 %v528
    %715 = vmatprep.subr.bf16.mxu0 0
    %716 = vmatpush2.bf16.msra.mxu0 %v527
    %717 = vmatprep.subr.bf16.mxu0 0
    %718 = vmatpush2.bf16.msra.mxu0 %v526
    %719 = vmatprep.subr.bf16.mxu0 0
    %720 = vmatpush2.bf16.msra.mxu0 %v525
    %721 = vmatprep.subr.bf16.mxu0 0
    %722 = vmatpush2.bf16.msra.mxu0 %v524
    %723 = vmatprep.subr.bf16.mxu0 0
    %724 = vmatpush2.bf16.msra.mxu0 %v523
    %725 = vmatprep.mubr.bf16.mxu0 %v216
    %726 = vmatmul.mubr.bf16.gmra.mxu0 %v215
    %v727 = vpop.f32.mrf.mxu0
    %v728 = vadd.f32 %v687, %v727
    %v729 = vpop.f32.mrf.mxu0
    %v730 = vpop.f32.mrf.mxu0
    %v731 = vadd.f32 %v690, %v730
    %v732 = vpop.f32.mrf.mxu0
    %733 = vdwg.mxu0
    %734 = vmatprep.subr.bf16.mxu0 0
    %735 = vmatpush1.bf16.msra.mxu0 %v538
    %736 = vmatprep.subr.bf16.mxu0 0
    %737 = vmatpush1.bf16.msra.mxu0 %v537
    %738 = vmatprep.subr.bf16.mxu0 0
    %739 = vmatpush1.bf16.msra.mxu0 %v536
    %740 = vmatprep.subr.bf16.mxu0 0
    %741 = vmatpush1.bf16.msra.mxu0 %v535
    %742 = vmatprep.subr.bf16.mxu0 0
    %743 = vmatpush1.bf16.msra.mxu0 %v534
    %744 = vmatprep.subr.bf16.mxu0 0
    %745 = vmatpush1.bf16.msra.mxu0 %v533
    %746 = vmatprep.subr.bf16.mxu0 0
    %747 = vmatpush1.bf16.msra.mxu0 %v532
    %748 = vmatprep.subr.bf16.mxu0 0
    %749 = vmatpush1.bf16.msra.mxu0 %v531
    %750 = vmatprep.subr.bf16.mxu0 0
    %751 = vmatpush2.bf16.msra.mxu0 %v546
    %752 = vmatprep.subr.bf16.mxu0 0
    %753 = vmatpush2.bf16.msra.mxu0 %v545
    %754 = vmatprep.subr.bf16.mxu0 0
    %755 = vmatpush2.bf16.msra.mxu0 %v544
    %756 = vmatprep.subr.bf16.mxu0 0
    %757 = vmatpush2.bf16.msra.mxu0 %v543
    %758 = vmatprep.subr.bf16.mxu0 0
    %759 = vmatpush2.bf16.msra.mxu0 %v542
    %760 = vmatprep.subr.bf16.mxu0 0
    %761 = vmatpush2.bf16.msra.mxu0 %v541
    %762 = vmatprep.subr.bf16.mxu0 0
    %763 = vmatpush2.bf16.msra.mxu0 %v540
    %764 = vmatprep.subr.bf16.mxu0 0
    %765 = vmatpush2.bf16.msra.mxu0 %v539
    %766 = vmatprep.mubr.bf16.mxu0 %v218
    %767 = vmatmul.mubr.bf16.gmra.mxu0 %v217
    %v768 = vpop.f32.mrf.mxu0
    %v769 = vadd.f32 %v728, %v768
    %v770 = vpop.f32.mrf.mxu0
    %v771 = vpop.f32.mrf.mxu0
    %v772 = vadd.f32 %v731, %v771
    %v773 = vpop.f32.mrf.mxu0
    %774 = vdwg.mxu0
    %v775 = vmul.f32 %v769, %v769
    %v776 = vmul.f32 %v772, %v772
    %777 = vadd.xlane.f32.xlu0 %v775
    %v778 = vpop.xlane.xlu0 %777
    %779 = vadd.xlane.f32.xlu0 %v776
    %v780 = vpop.xlane.xlu0 %779
    %v781 = vmax.f32 %v778, 1e-24
    %v782 = vmax.f32 %v780, 1e-24
    %v783 = vrsqrt.pop %v781
    %v784 = vrsqrt.pop %v782
    %v785 = vmul.f32 %v769, %v783
    %v786 = vmul.f32 %v772, %v784
    %787 = vst [vmem:[#allocation7] sm:$0xff] %v785
    %788 = vst [vmem:[#allocation7 + $0x8] sm:$0xff] %v786
    // Predicated region
    $region22: #{tpu_custom_call.1} parent=1 // pred_check
      _
    $region23: #{tpu_custom_call.1} parent=1 // pred_check_branch
      %790 = sbr.rel (0) target = $region25
    $region24: #{tpu_custom_call.1} parent=1 // pred_region
      %s792 = ssub.s32 256, 256
      %793 = vsyncadd [#allocation4], %s792
      %s794 = sshll.u32 [#allocation7], 4
      %s795 = int_to_ptr.vmem [resolvable:$true] %s794
      %800 = dma.vmem_to_hbm [thread:$0]  %s795, 256, %s3, [#allocation4], 128, 128, 8
    $region25: #{tpu_custom_call.1} parent=1 // pred_fallthru
      _
    // Predicated region
    $region26: #{tpu_custom_call.1} parent=1 // pred_check
      _
    $region27: #{tpu_custom_call.1} parent=1 // pred_check_branch
      %802 = sbr.rel (0) target = $region29
    $region28: #{tpu_custom_call.1} parent=1 // pred_region
      %803 = dma.done [#allocation4], 256
    $region29: #{tpu_custom_call.1} parent=1 // pred_fallthru
      _
    %804 = vsyncpa [#allocation3], 1
    %805 = vsyncpa [#allocation6], 1
    %806 = vsyncpa [#allocation4], 1

</llo_original>
